<compile_context>
chip_gen: v7x
topology: tpu7x:2x2x1
jax: 0.10.0
libtpu: 0.0.40
codegen_flags: <defaults>
</compile_context>

<pallas_src>
import functools
import math

import jax
import jax.numpy as jnp
from jax.experimental import pallas as pl
from jax.experimental.pallas import tpu as pltpu


def _round_up(x, m):
    return ((x + m - 1) // m) * m


# --------------------------- fused QKV projection ---------------------------

def _qkv_proj_kernel(xq_ref, xk_ref, xv_ref, w_ref, b_ref,
                     q_ref, k_ref, v_ref, *, q_scale):
    # x*_ref: [tm, E] bf16; w_ref: [E, D_pad] bf16; b_ref: [1, D_pad] f32
    # q/k/v_ref: [tm, D_pad] bf16
    w = w_ref[...]
    b = b_ref[...]
    q = jnp.dot(xq_ref[...], w, preferred_element_type=jnp.float32) + b
    q_ref[...] = (q * q_scale).astype(q_ref.dtype)   # fold 1/sqrt(d_k) into Q
    k = jnp.dot(xk_ref[...], w, preferred_element_type=jnp.float32) + b
    k_ref[...] = k.astype(k_ref.dtype)
    v = jnp.dot(xv_ref[...], w, preferred_element_type=jnp.float32) + b
    v_ref[...] = v.astype(v_ref.dtype)


def _pick_row_tile(rows, e, d_pad, budget_bytes=24 * 1024 * 1024):
    """Largest row tile (multiple of 8, divides rows) within a VMEM budget."""
    for t in (1024, 512, 256, 128, 64, 32, 16, 8):
        if rows % t != 0:
            continue
        # 3 bf16 input blocks + 3 bf16 output blocks, double-buffered, + w/b
        approx = 2 * (3 * t * e * 2 + 3 * t * d_pad * 2) + e * d_pad * 2 + d_pad * 4
        if approx <= budget_bytes:
            return t
    return 8


def _qkv_projection(xq, xk, xv, w_pad, b_pad, q_scale):
    rows, e = xq.shape
    d_pad = w_pad.shape[-1]
    tm = _pick_row_tile(rows, e, d_pad)
    kernel = functools.partial(_qkv_proj_kernel, q_scale=q_scale)
    out_sd = jax.ShapeDtypeStruct((rows, d_pad), jnp.bfloat16)
    return pl.pallas_call(
        kernel,
        out_shape=(out_sd, out_sd, out_sd),
        grid_spec=pltpu.PrefetchScalarGridSpec(
            num_scalar_prefetch=0,
            grid=(rows // tm,),
            in_specs=[
                pl.BlockSpec((tm, e), lambda i: (i, 0)),      # x_q rows
                pl.BlockSpec((tm, e), lambda i: (i, 0)),      # x_k rows
                pl.BlockSpec((tm, e), lambda i: (i, 0)),      # x_v rows
                pl.BlockSpec((e, d_pad), lambda i: (0, 0)),   # shared weight
                pl.BlockSpec((1, d_pad), lambda i: (0, 0)),   # shared bias
            ],
            out_specs=(
                pl.BlockSpec((tm, d_pad), lambda i: (i, 0)),
                pl.BlockSpec((tm, d_pad), lambda i: (i, 0)),
                pl.BlockSpec((tm, d_pad), lambda i: (i, 0)),
            ),
        ),
        compiler_params=pltpu.CompilerParams(
            dimension_semantics=("parallel",),
            vmem_limit_bytes=32 * 1024 * 1024,
        ),
    )(xq, xk, xv, w_pad, b_pad)


# ----------------------- flash-style attention kernel -----------------------

def _flash_attn_kernel(q_ref, k_ref, v_ref, o_ref, m_sc, l_sc, acc_sc,
                       *, kv_len, tk, needs_mask):
    ki = pl.program_id(2)

    @pl.when(ki == 0)
    def _():
        m_sc[...] = jnp.full_like(m_sc, -jnp.inf)
        l_sc[...] = jnp.zeros_like(l_sc)
        acc_sc[...] = jnp.zeros_like(acc_sc)

    # Q already carries the 1/sqrt(d_k) scale and all three are bf16 in HBM,
    # so no per-step scaling / casting is needed here.
    q = q_ref[0]                                      # [tq, D_pad] bf16
    k = k_ref[0]                                      # [tk, D_pad] bf16
    v = v_ref[0]                                      # [tk, D_pad] bf16

    # scores = Q @ K^T by contracting the last dims directly (no transpose).
    s = jax.lax.dot_general(q, k, (((1,), (1,)), ((), ())),
                            preferred_element_type=jnp.float32)  # [tq, tk]

    if needs_mask:  # static: only traced when the KV axis was padded
        # Padded K rows are NOT zero after projection (they carry the bias),
        # so masking is mandatory whenever S was padded.
        kv_pos = ki * tk + jax.lax.broadcasted_iota(jnp.int32, s.shape, 1)
        s = jnp.where(kv_pos < kv_len, s, -1e30)

    m_prev = m_sc[...]
    m_new = jnp.maximum(m_prev, jnp.max(s, axis=-1, keepdims=True))
    alpha = jnp.exp(m_prev - m_new)
    p = jnp.exp(s - m_new)
    l_sc[...] = alpha * l_sc[...] + jnp.sum(p, axis=-1, keepdims=True)
    acc_sc[...] = alpha * acc_sc[...] + jnp.dot(
        p.astype(jnp.bfloat16), v, preferred_element_type=jnp.float32)
    m_sc[...] = m_new

    @pl.when(ki == pl.num_programs(2) - 1)
    def _():
        # Normalize the [tq, D] accumulator (not the [tq, tk] weights);
        # approx reciprocal uses the otherwise-idle EUP slot.
        inv_l = pl.reciprocal(l_sc[...], approx=True)
        o_ref[0] = (acc_sc[...] * inv_l).astype(o_ref.dtype)
    # TODO(synk): query_mask/key_mask/mask path not implemented (defaults are
    # None in the reference forward); it would be an additive -inf mask on `s`.


def _attn_tiles(S, B):
    """Pick (tq, tk, S_pad): large lane/sublane-dense tiles, >=2 parallel
    grid units when possible (v7x megacore), modest padding waste."""
    s8 = _round_up(S, 8)
    if s8 <= 128:
        return s8, s8, s8                       # single full-extent tile
    if s8 <= 256:
        s_pad = _round_up(s8, 128)
        return 128, 128, s_pad
    tk = 256                                    # matches v6e/v7x 256-wide MXU
    s_pad = _round_up(s8, 256)
    if s_pad % 512 == 0 and B * (s_pad // 512) >= 2:
        tq = 512
    else:
        tq = 256
    return tq, tk, s_pad


def attention_head(query, key, value, w_q, b_q):
    """query/key/value: [B, S, E]; w_q: [E, D]; b_q: [D] -> [B, S, D] (f32)."""
    B, S, E = query.shape
    D = w_q.shape[-1]

    D_pad = _round_up(D, 128)                   # lane-dense blocks / stores
    tq, tk, S_pad = _attn_tiles(S, B)

    bf16 = jnp.bfloat16
    w_pad = jnp.pad(w_q.astype(jnp.float32), ((0, 0), (0, D_pad - D))).astype(bf16)
    b_pad = jnp.pad(b_q.astype(jnp.float32), (0, D_pad - D)).reshape(1, D_pad)

    def prep(x):
        x = x.astype(bf16)                      # bf16 MXU operands
        if S_pad != S:
            x = jnp.pad(x, ((0, 0), (0, S_pad - S), (0, 0)))
        return x.reshape(B * S_pad, E)          # free reshape (contiguous)

    q_scale = 1.0 / math.sqrt(D)                # true head_dim, not padded one
    Qr, Kr, Vr = _qkv_projection(prep(query), prep(key), prep(value),
                                 w_pad, b_pad, q_scale)
    Q = Qr.reshape(B, S_pad, D_pad)             # free reshapes (contiguous)
    K = Kr.reshape(B, S_pad, D_pad)
    V = Vr.reshape(B, S_pad, D_pad)

    kernel = functools.partial(
        _flash_attn_kernel, kv_len=S, tk=tk, needs_mask=(S_pad != S))

    out_pad = pl.pallas_call(
        kernel,
        out_shape=jax.ShapeDtypeStruct((B, S_pad, D_pad), jnp.float32),
        grid_spec=pltpu.PrefetchScalarGridSpec(
            num_scalar_prefetch=0,
            grid=(B, S_pad // tq, S_pad // tk),
            in_specs=[
                pl.BlockSpec((1, tq, D_pad), lambda b, qi, ki: (b, qi, 0)),  # Q
                pl.BlockSpec((1, tk, D_pad), lambda b, qi, ki: (b, ki, 0)),  # K
                pl.BlockSpec((1, tk, D_pad), lambda b, qi, ki: (b, ki, 0)),  # V
            ],
            out_specs=pl.BlockSpec((1, tq, D_pad), lambda b, qi, ki: (b, qi, 0)),
            scratch_shapes=[
                pltpu.VMEM((tq, 1), jnp.float32),      # running max m
                pltpu.VMEM((tq, 1), jnp.float32),      # running denom l
                pltpu.VMEM((tq, D_pad), jnp.float32),  # output accumulator
            ],
        ),
        compiler_params=pltpu.CompilerParams(
            dimension_semantics=("parallel", "parallel", "arbitrary"),
            vmem_limit_bytes=32 * 1024 * 1024,
        ),
    )(Q, K, V)

    return out_pad[:, :S, :D]


def _reference(query, key, value, w_q, b_q):
    """Pure-JAX reference mirroring the PyTorch forward."""
    proj = lambda x: jnp.einsum("bse,ed->bsd", x, w_q) + b_q
    Q, K, V = proj(query), proj(key), proj(value)
    d_k = Q.shape[-1]
    scores = jnp.einsum("bqd,bkd->bqk", Q, K) / math.sqrt(d_k)
    weights = jax.nn.softmax(scores, axis=-1)
    return jnp.einsum("bqk,bkd->bqd", weights, V)


if __name__ == "__main__":
    # Small deterministic shapes: batch=2, seq=8, embed_dim=32, head_dim=16
    B, S, E, D = 2, 8, 32, 16
    key0 = jax.random.PRNGKey(0)
    kq, kk, kv, kw, kb = jax.random.split(key0, 5)

    query = jax.random.normal(kq, (B, S, E), dtype=jnp.float32)
    key_in = jax.random.normal(kk, (B, S, E), dtype=jnp.float32)
    value = jax.random.normal(kv, (B, S, E), dtype=jnp.float32)

    # nn.Linear(embed_dim, head_dim): weight [D, E], bias [D]; we store W as [E, D].
    bound = 1.0 / math.sqrt(E)
    w_q = jax.random.uniform(kw, (E, D), minval=-bound, maxval=bound,
                             dtype=jnp.float32)
    b_q = jax.random.uniform(kb, (D,), minval=-bound, maxval=bound,
                             dtype=jnp.float32)

    out = attention_head(query, key_in, value, w_q, b_q)
    out = jax.block_until_ready(out)

    ref = _reference(query, key_in, value, w_q, b_q)
    assert out.shape == (B, S, D)
    # bf16 weights + bf16 Q/K/V intermediates (f32 accumulation) -> loose tol
    assert jnp.allclose(out, ref, atol=4e-2, rtol=4e-2), (
        "mismatch vs reference: max|diff|="
        f"{float(jnp.max(jnp.abs(out - ref)))}")

    print("KERNEL_OK")
</pallas_src>

<mosaic_0001>
module attributes {stable_mosaic.version = 11 : i64} {
  func.func @_qkv_proj_kernel(%arg0: i32, %arg1: memref<16x32xbf16, #tpu.memory_space<vmem>>, %arg2: memref<16x32xbf16, #tpu.memory_space<vmem>>, %arg3: memref<16x32xbf16, #tpu.memory_space<vmem>>, %arg4: memref<32x128xbf16, #tpu.memory_space<vmem>>, %arg5: memref<1x128xf32, #tpu.memory_space<vmem>>, %arg6: memref<16x128xbf16, #tpu.memory_space<vmem>>, %arg7: memref<16x128xbf16, #tpu.memory_space<vmem>>, %arg8: memref<16x128xbf16, #tpu.memory_space<vmem>>) attributes {dimension_semantics = [#tpu.dimension_semantics<parallel>], iteration_bounds = array<i64: 1>, scalar_prefetch = 0 : i64, scratch_operands = 0 : i64, tpu.core_type = #tpu.core_type<tc>, window_params = [{transform_indices = @transform_0, window_bounds = array<i64: 16, 32>}, {transform_indices = @transform_1, window_bounds = array<i64: 16, 32>}, {transform_indices = @transform_2, window_bounds = array<i64: 16, 32>}, {pipeline_mode = #tpu.pipeline_mode<synchronous>, transform_indices = @transform_3, window_bounds = array<i64: 32, 128>}, {pipeline_mode = #tpu.pipeline_mode<synchronous>, transform_indices = @transform_4, window_bounds = array<i64: 1, 128>}, {transform_indices = @transform_5, window_bounds = array<i64: 16, 128>}, {transform_indices = @transform_6, window_bounds = array<i64: 16, 128>}, {transform_indices = @transform_7, window_bounds = array<i64: 16, 128>}]} {
    %c0 = arith.constant 0 : index
    %c0_0 = arith.constant 0 : index
    %0 = vector.load %arg4[%c0, %c0_0] : memref<32x128xbf16, #tpu.memory_space<vmem>>, vector<32x128xbf16>
    %c0_1 = arith.constant 0 : index
    %c0_2 = arith.constant 0 : index
    %1 = vector.load %arg5[%c0_1, %c0_2] : memref<1x128xf32, #tpu.memory_space<vmem>>, vector<1x128xf32>
    %c0_3 = arith.constant 0 : index
    %c0_4 = arith.constant 0 : index
    %2 = vector.load %arg1[%c0_3, %c0_4] : memref<16x32xbf16, #tpu.memory_space<vmem>>, vector<16x32xbf16>
    %cst = arith.constant dense<0.000000e+00> : vector<16x128xf32>
    %3 = tpu.matmul %2, %0, %cst {dimension_numbers = #tpu.dot_dimension_numbers<[1], [0], [0], [1], [0, 0, 1, 1], [], []>} : vector<16x32xbf16>, vector<32x128xbf16>, vector<16x128xf32> -> vector<16x128xf32>
    %4 = vector.broadcast %1 : vector<1x128xf32> to vector<16x128xf32>
    %5 = arith.addf %3, %4 : vector<16x128xf32>
    %cst_5 = arith.constant 2.500000e-01 : f32
    %6 = vector.broadcast %cst_5 : f32 to vector<16x128xf32>
    %7 = arith.mulf %5, %6 : vector<16x128xf32>
    %8 = arith.truncf %7 : vector<16x128xf32> to vector<16x128xbf16>
    %c0_6 = arith.constant 0 : index
    %c0_7 = arith.constant 0 : index
    %9 = vector.load %arg6[%c0_6, %c0_7] : memref<16x128xbf16, #tpu.memory_space<vmem>>, vector<16x128xbf16>
    tpu.vector_store %arg6[%c0_6, %c0_7], %8 {strides = array<i32>} : memref<16x128xbf16, #tpu.memory_space<vmem>>, vector<16x128xbf16>,
    %c0_8 = arith.constant 0 : index
    %c0_9 = arith.constant 0 : index
    %10 = vector.load %arg2[%c0_8, %c0_9] : memref<16x32xbf16, #tpu.memory_space<vmem>>, vector<16x32xbf16>
    %cst_10 = arith.constant dense<0.000000e+00> : vector<16x128xf32>
    %11 = tpu.matmul %10, %0, %cst_10 {dimension_numbers = #tpu.dot_dimension_numbers<[1], [0], [0], [1], [0, 0, 1, 1], [], []>} : vector<16x32xbf16>, vector<32x128xbf16>, vector<16x128xf32> -> vector<16x128xf32>
    %12 = vector.broadcast %1 : vector<1x128xf32> to vector<16x128xf32>
    %13 = arith.addf %11, %12 : vector<16x128xf32>
    %14 = arith.truncf %13 : vector<16x128xf32> to vector<16x128xbf16>
    %c0_11 = arith.constant 0 : index
    %c0_12 = arith.constant 0 : index
    %15 = vector.load %arg7[%c0_11, %c0_12] : memref<16x128xbf16, #tpu.memory_space<vmem>>, vector<16x128xbf16>
    tpu.vector_store %arg7[%c0_11, %c0_12], %14 {strides = array<i32>} : memref<16x128xbf16, #tpu.memory_space<vmem>>, vector<16x128xbf16>,
    %c0_13 = arith.constant 0 : index
    %c0_14 = arith.constant 0 : index
    %16 = vector.load %arg3[%c0_13, %c0_14] : memref<16x32xbf16, #tpu.memory_space<vmem>>, vector<16x32xbf16>
    %cst_15 = arith.constant dense<0.000000e+00> : vector<16x128xf32>
    %17 = tpu.matmul %16, %0, %cst_15 {dimension_numbers = #tpu.dot_dimension_numbers<[1], [0], [0], [1], [0, 0, 1, 1], [], []>} : vector<16x32xbf16>, vector<32x128xbf16>, vector<16x128xf32> -> vector<16x128xf32>
    %18 = vector.broadcast %1 : vector<1x128xf32> to vector<16x128xf32>
    %19 = arith.addf %17, %18 : vector<16x128xf32>
    %20 = arith.truncf %19 : vector<16x128xf32> to vector<16x128xbf16>
    %c0_16 = arith.constant 0 : index
    %c0_17 = arith.constant 0 : index
    %21 = vector.load %arg8[%c0_16, %c0_17] : memref<16x128xbf16, #tpu.memory_space<vmem>>, vector<16x128xbf16>
    tpu.vector_store %arg8[%c0_16, %c0_17], %20 {strides = array<i32>} : memref<16x128xbf16, #tpu.memory_space<vmem>>, vector<16x128xbf16>,
    return
  }
  func.func @transform_0(%arg0: i32) -> (i32, i32) {
    %c0_i32 = arith.constant 0 : i32
    %c0_i32_0 = arith.constant 0 : i32
    return %arg0, %c0_i32 : i32, i32
  }
  func.func @transform_1(%arg0: i32) -> (i32, i32) {
    %c0_i32 = arith.constant 0 : i32
    %c0_i32_0 = arith.constant 0 : i32
    return %arg0, %c0_i32 : i32, i32
  }
  func.func @transform_2(%arg0: i32) -> (i32, i32) {
    %c0_i32 = arith.constant 0 : i32
    %c0_i32_0 = arith.constant 0 : i32
    return %arg0, %c0_i32 : i32, i32
  }
  func.func @transform_3(%arg0: i32) -> (i32, i32) {
    %c0_i32 = arith.constant 0 : i32
    %c0_i32_0 = arith.constant 0 : i32
    %c0_i32_1 = arith.constant 0 : i32
    return %c0_i32, %c0_i32_0 : i32, i32
  }
  func.func @transform_4(%arg0: i32) -> (i32, i32) {
    %c0_i32 = arith.constant 0 : i32
    %c0_i32_0 = arith.constant 0 : i32
    %c0_i32_1 = arith.constant 0 : i32
    return %c0_i32, %c0_i32_0 : i32, i32
  }
  func.func @transform_5(%arg0: i32) -> (i32, i32) {
    %c0_i32 = arith.constant 0 : i32
    %c0_i32_0 = arith.constant 0 : i32
    return %arg0, %c0_i32 : i32, i32
  }
  func.func @transform_6(%arg0: i32) -> (i32, i32) {
    %c0_i32 = arith.constant 0 : i32
    %c0_i32_0 = arith.constant 0 : i32
    return %arg0, %c0_i32 : i32, i32
  }
  func.func @transform_7(%arg0: i32) -> (i32, i32) {
    %c0_i32 = arith.constant 0 : i32
    %c0_i32_0 = arith.constant 0 : i32
    return %arg0, %c0_i32 : i32, i32
  }
}

</mosaic_0001>

<llo_original>
// kernel: tpu_custom_call.1
$region0: #{tpu_custom_call.1}
  #allocation0 [shape = 'u32[]', space=smem, size = 0x4, offset = 0x4, fixed_abs, tag = 'smem constant byte address 0x4 - core index']
  #allocation1 [shape = 'u32[144,128]{1,0:T(1,128)}', space=vmem, size = 0x12000, scoped, tag = 'internal scratch']
  %s0 = inlined_call_operand.hbm [shape: bf16[16,32], index: 0, kind: input, shape index: {}]
  %s1 = inlined_call_operand.hbm [shape: bf16[16,32], index: 1, kind: input, shape index: {}]
  %s2 = inlined_call_operand.hbm [shape: bf16[16,32], index: 2, kind: input, shape index: {}]
  %s3 = inlined_call_operand.hbm [shape: bf16[32,128], index: 3, kind: input, shape index: {}]
  %s4 = inlined_call_operand.vmem [shape: f32[1,128], index: 4, kind: input, shape index: {}]
  %s5 = inlined_call_operand.hbm [shape: bf16[16,128], index: 5, kind: output, shape index: {0}]
  %s6 = inlined_call_operand.hbm [shape: bf16[16,128], index: 6, kind: output, shape index: {1}]
  %s7 = inlined_call_operand.hbm [shape: bf16[16,128], index: 7, kind: output, shape index: {2}]
  %8 = xla_tuple %s5, %s6, %s7
  %s9 = sld [smem:[#allocation0]]
  $region62: #{tpu_custom_call.1} parent=0
    _
  %s11 = ssub.s32 1, %s9
  %s12 = scalar_select 0, %s11, %s9
  $region1: #{tpu_custom_call.1} parent=0
    #allocation2 [shape = 'u8[4096]{0}', space=vmem, size = 0x1000, scoped, tag = 'input window, operand 0, single buffered']
    #allocation3 [shape = 's32[1]{0}', space=sflag, size = 0x4, scoped, tag = 'scoped memory for tpu_custom_call.1']
    #allocation4 [shape = 's32[1]{0}', space=sflag, size = 0x4, scoped, tag = 'scoped memory for tpu_custom_call.1']
    #allocation5 [shape = 'u8[4096]{0}', space=vmem, size = 0x1000, scoped, tag = 'input window, operand 1, single buffered']
    #allocation6 [shape = 's32[1]{0}', space=sflag, size = 0x4, scoped, tag = 'scoped memory for tpu_custom_call.1']
    #allocation7 [shape = 'u8[4096]{0}', space=vmem, size = 0x1000, scoped, tag = 'input window, operand 2, single buffered']
    #allocation8 [shape = 'u8[8192]{0}', space=vmem, size = 0x2000, scoped, tag = 'input window, operand 3, single buffered']
    #allocation9 [shape = 's32[1]{0}', space=sflag, size = 0x4, scoped, tag = 'scoped memory for tpu_custom_call.1']
    #allocation10 [shape = 'u8[4096]{0}', space=vmem, size = 0x1000, scoped, tag = 'output window, operand 0, single buffered']
    #allocation11 [shape = 'u8[4096]{0}', space=vmem, size = 0x1000, scoped, tag = 'output window, operand 1, single buffered']
    #allocation12 [shape = 's32[1]{0}', space=sflag, size = 0x4, scoped, tag = 'scoped memory for tpu_custom_call.1']
    #allocation13 [shape = 'u8[4096]{0}', space=vmem, size = 0x1000, scoped, tag = 'output window, operand 2, single buffered']
    %13 = vsyncpa [#allocation3], 0
    %14 = vsyncpa [#allocation6], 0
    %15 = vsyncpa [#allocation9], 0
    %16 = vsyncpa [#allocation4], 0
    %17 = vsyncpa [#allocation12], 0
    // Predicated region
    $region2: #{tpu_custom_call.1} parent=1 // pred_check
      _
    $region3: #{tpu_custom_call.1} parent=1 // pred_check_branch
      %19 = sbr.rel (0) target = $region5
    $region4: #{tpu_custom_call.1} parent=1 // pred_region
      %s21 = ssub.s32 128, 128
      %22 = vsyncadd [#allocation3], %s21
      %s23 = sshll.u32 [#allocation2], 4
      %s24 = int_to_ptr.vmem [resolvable:$true] %s23
      %29 = dma.hbm_to_vmem [thread:$0]  %s0, 128, %s24, [#allocation3], 64, 64, 4
    $region5: #{tpu_custom_call.1} parent=1 // pred_fallthru
      _
    // Predicated region
    $region6: #{tpu_custom_call.1} parent=1 // pred_check
      _
    $region7: #{tpu_custom_call.1} parent=1 // pred_check_branch
      %31 = sbr.rel (0) target = $region9
    $region8: #{tpu_custom_call.1} parent=1 // pred_region
      %s33 = ssub.s32 128, 128
      %34 = vsyncadd [#allocation6], %s33
      %s35 = sshll.u32 [#allocation5], 4
      %s36 = int_to_ptr.vmem [resolvable:$true] %s35
      %41 = dma.hbm_to_vmem [thread:$0]  %s1, 128, %s36, [#allocation6], 64, 64, 4
    $region9: #{tpu_custom_call.1} parent=1 // pred_fallthru
      _
    // Predicated region
    $region10: #{tpu_custom_call.1} parent=1 // pred_check
      _
    $region11: #{tpu_custom_call.1} parent=1 // pred_check_branch
      %43 = sbr.rel (0) target = $region13
    $region12: #{tpu_custom_call.1} parent=1 // pred_region
      %s45 = ssub.s32 128, 128
      %46 = vsyncadd [#allocation6], %s45
      %s47 = sshll.u32 [#allocation7], 4
      %s48 = int_to_ptr.vmem [resolvable:$true] %s47
      %53 = dma.hbm_to_vmem [thread:$0]  %s2, 128, %s48, [#allocation6], 64, 64, 4
    $region13: #{tpu_custom_call.1} parent=1 // pred_fallthru
      _
    // Predicated region
    $region14: #{tpu_custom_call.1} parent=1 // pred_check
      _
    $region15: #{tpu_custom_call.1} parent=1 // pred_check_branch
      %55 = sbr.rel (0) target = $region17
    $region16: #{tpu_custom_call.1} parent=1 // pred_region
      %s57 = ssub.s32 256, 256
      %58 = vsyncadd [#allocation9], %s57
      %s59 = sshll.u32 [#allocation8], 4
      %s60 = int_to_ptr.vmem [resolvable:$true] %s59
      %65 = dma.hbm_to_vmem [thread:$0]  %s3, 256, %s60, [#allocation9], 64, 64, 4
    $region17: #{tpu_custom_call.1} parent=1 // pred_fallthru
      _
    // Predicated region
    $region18: #{tpu_custom_call.1} parent=1 // pred_check
      _
    $region19: #{tpu_custom_call.1} parent=1 // pred_check_branch
      %67 = sbr.rel (0) target = $region21
    $region20: #{tpu_custom_call.1} parent=1 // pred_region
      _
    $region21: #{tpu_custom_call.1} parent=1 // pred_fallthru
      _
    // Predicated region
    $region22: #{tpu_custom_call.1} parent=1 // pred_check
      _
    $region23: #{tpu_custom_call.1} parent=1 // pred_check_branch
      %69 = sbr.rel (0) target = $region25
    $region24: #{tpu_custom_call.1} parent=1 // pred_region
      %70 = dma.done [#allocation3], 128
    $region25: #{tpu_custom_call.1} parent=1 // pred_fallthru
      _
    // Predicated region
    $region26: #{tpu_custom_call.1} parent=1 // pred_check
      _
    $region27: #{tpu_custom_call.1} parent=1 // pred_check_branch
      %72 = sbr.rel (0) target = $region29
    $region28: #{tpu_custom_call.1} parent=1 // pred_region
      %73 = dma.done [#allocation6], 128
    $region29: #{tpu_custom_call.1} parent=1 // pred_fallthru
      _
    // Predicated region
    $region30: #{tpu_custom_call.1} parent=1 // pred_check
      _
    $region31: #{tpu_custom_call.1} parent=1 // pred_check_branch
      %75 = sbr.rel (0) target = $region33
    $region32: #{tpu_custom_call.1} parent=1 // pred_region
      %76 = dma.done [#allocation6], 128
    $region33: #{tpu_custom_call.1} parent=1 // pred_fallthru
      _
    // Predicated region
    $region34: #{tpu_custom_call.1} parent=1 // pred_check
      _
    $region35: #{tpu_custom_call.1} parent=1 // pred_check_branch
      %78 = sbr.rel (0) target = $region37
    $region36: #{tpu_custom_call.1} parent=1 // pred_region
      %79 = dma.done [#allocation9], 256
    $region37: #{tpu_custom_call.1} parent=1 // pred_fallthru
      _
    %v81 = vld [vmem:[#allocation8] sm:$0xf]
    %v82 = vld [vmem:[#allocation8 + $0x4] sm:$0xf]
    %v83 = vld [vmem:[#allocation8 + $0x8] sm:$0xf]
    %v84 = vld [vmem:[#allocation8 + $0xc] sm:$0xf]
    %v85 = vld [vmem:[%s4] sm:$0x1]
    %v86 = vld [vmem:[#allocation2] sm:$0xf]
    %v87 = vld [vmem:[#allocation2 + $0x4] sm:$0xf]
    %v89 = vlaneseq
    %v90 = vshrl.u32 %v89, 7
    %v91 = vsub.s32 0, %v90
    %v92 = vrot.slane %v85, %v91
    %v96 = vunpack.c.l.b16 %v86
    %v97 = vunpack.c.l.b16 %v87
    %v98 = vpack.c.b16 %v97, %v96
    %v103 = vunpack.c.l.b16 %v81
    %v104 = vunpack.c.l.b16 %v82
    %v105 = vunpack.c.l.b16 %v83
    %v106 = vunpack.c.l.b16 %v84
    %v107 = vpack.c.b16 %v104, %v103
    %v108 = vpack.c.b16 %v106, %v105
    %vm111 = vcmask 261120
    %v113 = vsel %vm111, %v98, 0
    %115 = vmatprep.subr.bf16.mxu0 0
    %116 = vmatpush1.bf16.msra.mxu0 %v107
    %117 = vmatprep.subr.bf16.mxu0 0
    %118 = vmatpush1.bf16.msra.mxu0 %v108
    %119 = vmatprep.subr.bf16.mxu0 0
    %120 = vmatpush1.bf16.msra.mxu0 0
    %121 = vmatprep.subr.bf16.mxu0 0
    %122 = vmatpush1.bf16.msra.mxu0 0
    %123 = vmatprep.subr.bf16.mxu0 0
    %124 = vmatpush1.bf16.msra.mxu0 0
    %125 = vmatprep.subr.bf16.mxu0 0
    %126 = vmatpush1.bf16.msra.mxu0 0
    %127 = vmatprep.subr.bf16.mxu0 0
    %128 = vmatpush1.bf16.msra.mxu0 0
    %129 = vmatprep.subr.bf16.mxu0 0
    %130 = vmatpush1.bf16.msra.mxu0 0
    %131 = vmatprep.subr.bf16.mxu0 0
    %132 = vmatpush1.bf16.msra.mxu0 0
    %133 = vmatprep.subr.bf16.mxu0 0
    %134 = vmatpush1.bf16.msra.mxu0 0
    %135 = vmatprep.subr.bf16.mxu0 0
    %136 = vmatpush1.bf16.msra.mxu0 0
    %137 = vmatprep.subr.bf16.mxu0 0
    %138 = vmatpush1.bf16.msra.mxu0 0
    %139 = vmatprep.subr.bf16.mxu0 0
    %140 = vmatpush1.bf16.msra.mxu0 0
    %141 = vmatprep.subr.bf16.mxu0 0
    %142 = vmatpush1.bf16.msra.mxu0 0
    %143 = vmatprep.subr.bf16.mxu0 0
    %144 = vmatpush1.bf16.msra.mxu0 0
    %145 = vmatprep.subr.bf16.mxu0 0
    %146 = vmatpush1.bf16.msra.mxu0 0
    %147 = vmatprep.mubr.bf16.mxu0 0
    %148 = vmatmul.mubr.bf16.gmra.mrb[0].mxu0 %v113
    %v149 = vpop.f32.mrb[0].mxu0
    %v150 = vadd.f32 %v92, %v149
    %v151 = vpop.f32.mrb[0].mxu0
    %v152 = vpop.f32.mrb[0].mxu0
    %v153 = vadd.f32 %v92, %v152
    %v154 = vpop.f32.mrb[0].mxu0
    %155 = vdwg.mxu0
    %v156 = vmul.f32 %v150, 0.25
    %v157 = vmul.f32 %v153, 0.25
    %v158 = vpack.c.bf16 %v157, %v156
    %v160 = vunpack.c.l.b16 %v158
    %v161 = vunpack.c.h.b16 %v158
    %v162 = vpack.c.b16 %v160, %v160
    %v163 = vpack.c.b16 %v161, %v161
    %166 = vst [vmem:[#allocation10] sm:$0xf] %v162
    %167 = vst [vmem:[#allocation10 + $0x4] sm:$0xf] %v163
    %v168 = vld [vmem:[#allocation5] sm:$0xf]
    %v169 = vld [vmem:[#allocation5 + $0x4] sm:$0xf]
    %v172 = vunpack.c.l.b16 %v168
    %v173 = vunpack.c.l.b16 %v169
    %v174 = vpack.c.b16 %v173, %v172
    %v176 = vsel %vm111, %v174, 0
    %178 = vmatprep.subr.bf16.mxu0 0
    %179 = vmatpush1.bf16.msra.mxu0 %v107
    %180 = vmatprep.subr.bf16.mxu0 0
    %181 = vmatpush1.bf16.msra.mxu0 %v108
    %182 = vmatprep.subr.bf16.mxu0 0
    %183 = vmatpush1.bf16.msra.mxu0 0
    %184 = vmatprep.subr.bf16.mxu0 0
    %185 = vmatpush1.bf16.msra.mxu0 0
    %186 = vmatprep.subr.bf16.mxu0 0
    %187 = vmatpush1.bf16.msra.mxu0 0
    %188 = vmatprep.subr.bf16.mxu0 0
    %189 = vmatpush1.bf16.msra.mxu0 0
    %190 = vmatprep.subr.bf16.mxu0 0
    %191 = vmatpush1.bf16.msra.mxu0 0
    %192 = vmatprep.subr.bf16.mxu0 0
    %193 = vmatpush1.bf16.msra.mxu0 0
    %194 = vmatprep.subr.bf16.mxu0 0
    %195 = vmatpush1.bf16.msra.mxu0 0
    %196 = vmatprep.subr.bf16.mxu0 0
    %197 = vmatpush1.bf16.msra.mxu0 0
    %198 = vmatprep.subr.bf16.mxu0 0
    %199 = vmatpush1.bf16.msra.mxu0 0
    %200 = vmatprep.subr.bf16.mxu0 0
    %201 = vmatpush1.bf16.msra.mxu0 0
    %202 = vmatprep.subr.bf16.mxu0 0
    %203 = vmatpush1.bf16.msra.mxu0 0
    %204 = vmatprep.subr.bf16.mxu0 0
    %205 = vmatpush1.bf16.msra.mxu0 0
    %206 = vmatprep.subr.bf16.mxu0 0
    %207 = vmatpush1.bf16.msra.mxu0 0
    %208 = vmatprep.subr.bf16.mxu0 0
    %209 = vmatpush1.bf16.msra.mxu0 0
    %210 = vmatprep.mubr.bf16.mxu0 0
    %211 = vmatmul.mubr.bf16.gmra.mrb[0].mxu0 %v176
    %v212 = vpop.f32.mrb[0].mxu0
    %v213 = vadd.f32 %v92, %v212
    %v214 = vpop.f32.mrb[0].mxu0
    %v215 = vpop.f32.mrb[0].mxu0
    %v216 = vadd.f32 %v92, %v215
    %v217 = vpop.f32.mrb[0].mxu0
    %218 = vdwg.mxu0
    %v219 = vpack.c.bf16 %v216, %v213
    %v221 = vunpack.c.l.b16 %v219
    %v222 = vunpack.c.h.b16 %v219
    %v223 = vpack.c.b16 %v221, %v221
    %v224 = vpack.c.b16 %v222, %v222
    %227 = vst [vmem:[#allocation11] sm:$0xf] %v223
    %228 = vst [vmem:[#allocation11 + $0x4] sm:$0xf] %v224
    %v229 = vld [vmem:[#allocation7] sm:$0xf]
    %v230 = vld [vmem:[#allocation7 + $0x4] sm:$0xf]
    %v233 = vunpack.c.l.b16 %v229
    %v234 = vunpack.c.l.b16 %v230
    %v235 = vpack.c.b16 %v234, %v233
    %v237 = vsel %vm111, %v235, 0
    %239 = vmatprep.subr.bf16.mxu0 0
    %240 = vmatpush1.bf16.msra.mxu0 %v107
    %241 = vmatprep.subr.bf16.mxu0 0
    %242 = vmatpush1.bf16.msra.mxu0 %v108
    %243 = vmatprep.subr.bf16.mxu0 0
    %244 = vmatpush1.bf16.msra.mxu0 0
    %245 = vmatprep.subr.bf16.mxu0 0
    %246 = vmatpush1.bf16.msra.mxu0 0
    %247 = vmatprep.subr.bf16.mxu0 0
    %248 = vmatpush1.bf16.msra.mxu0 0
    %249 = vmatprep.subr.bf16.mxu0 0
    %250 = vmatpush1.bf16.msra.mxu0 0
    %251 = vmatprep.subr.bf16.mxu0 0
    %252 = vmatpush1.bf16.msra.mxu0 0
    %253 = vmatprep.subr.bf16.mxu0 0
    %254 = vmatpush1.bf16.msra.mxu0 0
    %255 = vmatprep.subr.bf16.mxu0 0
    %256 = vmatpush1.bf16.msra.mxu0 0
    %257 = vmatprep.subr.bf16.mxu0 0
    %258 = vmatpush1.bf16.msra.mxu0 0
    %259 = vmatprep.subr.bf16.mxu0 0
    %260 = vmatpush1.bf16.msra.mxu0 0
    %261 = vmatprep.subr.bf16.mxu0 0
    %262 = vmatpush1.bf16.msra.mxu0 0
    %263 = vmatprep.subr.bf16.mxu0 0
    %264 = vmatpush1.bf16.msra.mxu0 0
    %265 = vmatprep.subr.bf16.mxu0 0
    %266 = vmatpush1.bf16.msra.mxu0 0
    %267 = vmatprep.subr.bf16.mxu0 0
    %268 = vmatpush1.bf16.msra.mxu0 0
    %269 = vmatprep.subr.bf16.mxu0 0
    %270 = vmatpush1.bf16.msra.mxu0 0
    %271 = vmatprep.mubr.bf16.mxu0 0
    %272 = vmatmul.mubr.bf16.gmra.mrb[0].mxu0 %v237
    %v273 = vpop.f32.mrb[0].mxu0
    %v274 = vadd.f32 %v92, %v273
    %v275 = vpop.f32.mrb[0].mxu0
    %v276 = vpop.f32.mrb[0].mxu0
    %v277 = vadd.f32 %v92, %v276
    %v278 = vpop.f32.mrb[0].mxu0
    %279 = vdwg.mxu0
    %v280 = vpack.c.bf16 %v277, %v274
    %v282 = vunpack.c.l.b16 %v280
    %v283 = vunpack.c.h.b16 %v280
    %v284 = vpack.c.b16 %v282, %v282
    %v285 = vpack.c.b16 %v283, %v283
    %288 = vst [vmem:[#allocation13] sm:$0xf] %v284
    %289 = vst [vmem:[#allocation13 + $0x4] sm:$0xf] %v285
    // Predicated region
    $region38: #{tpu_custom_call.1} parent=1 // pred_check
      _
    $region39: #{tpu_custom_call.1} parent=1 // pred_check_branch
      %291 = sbr.rel (0) target = $region41
    $region40: #{tpu_custom_call.1} parent=1 // pred_region
      %s293 = ssub.s32 128, 128
      %294 = vsyncadd [#allocation4], %s293
      %s295 = sshll.u32 [#allocation10], 4
      %s296 = int_to_ptr.vmem [resolvable:$true] %s295
      %301 = dma.vmem_to_hbm [thread:$0]  %s296, 128, %s5, [#allocation4], 64, 64, 4
    $region41: #{tpu_custom_call.1} parent=1 // pred_fallthru
      _
    // Predicated region
    $region42: #{tpu_custom_call.1} parent=1 // pred_check
      _
    $region43: #{tpu_custom_call.1} parent=1 // pred_check_branch
      %303 = sbr.rel (0) target = $region45
    $region44: #{tpu_custom_call.1} parent=1 // pred_region
      %s305 = ssub.s32 128, 128
      %306 = vsyncadd [#allocation12], %s305
      %s307 = sshll.u32 [#allocation11], 4
      %s308 = int_to_ptr.vmem [resolvable:$true] %s307
      %313 = dma.vmem_to_hbm [thread:$0]  %s308, 128, %s6, [#allocation12], 64, 64, 4
    $region45: #{tpu_custom_call.1} parent=1 // pred_fallthru
      _
    // Predicated region
    $region46: #{tpu_custom_call.1} parent=1 // pred_check
      _
    $region47: #{tpu_custom_call.1} parent=1 // pred_check_branch
      %315 = sbr.rel (0) target = $region49
    $region48: #{tpu_custom_call.1} parent=1 // pred_region
      %s317 = ssub.s32 128, 128
      %318 = vsyncadd [#allocation12], %s317
      %s319 = sshll.u32 [#allocation13], 4
      %s320 = int_to_ptr.vmem [resolvable:$true] %s319
      %325 = dma.vmem_to_hbm [thread:$0]  %s320, 128, %s7, [#allocation12], 64, 64, 4
    $region49: #{tpu_custom_call.1} parent=1 // pred_fallthru
      _
    // Predicated region
    $region50: #{tpu_custom_call.1} parent=1 // pred_check
      _
    $region51: #{tpu_custom_call.1} parent=1 // pred_check_branch
      %327 = sbr.rel (0) target = $region53
    $region52: #{tpu_custom_call.1} parent=1 // pred_region
      %328 = dma.done [#allocation4], 128
    $region53: #{tpu_custom_call.1} parent=1 // pred_fallthru
      _
    // Predicated region
    $region54: #{tpu_custom_call.1} parent=1 // pred_check
      _
    $region55: #{tpu_custom_call.1} parent=1 // pred_check_branch
      %330 = sbr.rel (0) target = $region57
    $region56: #{tpu_custom_call.1} parent=1 // pred_region
      %331 = dma.done [#allocation12], 128
    $region57: #{tpu_custom_call.1} parent=1 // pred_fallthru
      _
    // Predicated region
    $region58: #{tpu_custom_call.1} parent=1 // pred_check
      _
    $region59: #{tpu_custom_call.1} parent=1 // pred_check_branch
      %333 = sbr.rel (0) target = $region61
    $region60: #{tpu_custom_call.1} parent=1 // pred_region
      %334 = dma.done [#allocation12], 128
    $region61: #{tpu_custom_call.1} parent=1 // pred_fallthru
      _
    %335 = vsyncpa [#allocation3], 1
    %336 = vsyncpa [#allocation6], 1
    %337 = vsyncpa [#allocation9], 1
    %338 = vsyncpa [#allocation4], 1
    %339 = vsyncpa [#allocation12], 1

</llo_original>
